<compile_context>
chip_gen: v5e
topology: v5e:2x2
jax: 0.10.0
libtpu: 0.0.40
codegen_flags: <defaults>
</compile_context>

<pallas_src>
from math import sqrt

import jax
import jax.numpy as jnp
from jax.experimental import pallas as pl
from jax.experimental.pallas import tpu as pltpu

LANE = 128      # lane width: every layer's output dim padded to this
SUBLANE = 8     # f32 sublane granularity for small-batch tiles


def _round_up(n: int, m: int) -> int:
    return ((n + m - 1) // m) * m


# --------------------------------------------------------------------------
# Kernel body
# --------------------------------------------------------------------------
def _make_mlp_kernel(num_layers: int, output_activation, num_valid_output: int,
                     padded_output: int):
    """Fused MLP kernel for `num_layers` Linear layers.

    Kernel args: (x_ref, w0, b0, w1, b1, ..., out_ref).
    Weights are [in_i, out_pad_i] (pre-transposed), biases [1, out_pad_i] f32.
    """

    def kernel(*refs):
        x_ref = refs[0]
        out_ref = refs[-1]
        param_refs = refs[1:-1]

        x = x_ref[...]                       # cast once, directly to dot dtype
        for i in range(num_layers):
            w = param_refs[2 * i][...]                           # [in, out_p]
            b = param_refs[2 * i + 1][...]                       # [1, out_p] f32
            # MXU fed in the weights' storage dtype (bf16 fast path), f32 acc.
            h = jnp.dot(x.astype(w.dtype), w,
                        preferred_element_type=jnp.float32)
            # Bias/ReLU chain kept in f32 (portable to v5e, which has no bf16
            # VPU/EUP).  TODO(synk): optional bf16 elementwise on v6e/v7x.
            x = h + b
            if i != num_layers - 1:
                x = jnp.maximum(x, 0.0)      # F.relu between all but last layer

        if output_activation == "sigmoid":
            x = jax.nn.sigmoid(x)
        elif output_activation == "tanh":
            x = jnp.tanh(x)
        elif output_activation == "softmax":
            if num_valid_output != padded_output:
                # Mask padded output lanes so they don't pollute the denom.
                lane = jax.lax.broadcasted_iota(jnp.int32, x.shape,
                                                dimension=x.ndim - 1)
                x = jnp.where(lane < num_valid_output, x, -jnp.inf)
            x = jax.nn.softmax(x, axis=-1)
        # output_activation is None -> identity

        out_ref[...] = x.astype(out_ref.dtype)

    return kernel


# --------------------------------------------------------------------------
# Parameter preparation (done once, hoisted out of the forward path)
# --------------------------------------------------------------------------
def prepare_mlp_params(weights, biases, param_dtype=None):
    """Pad/convert parameters once.

    weights[i]: [in_i, out_i] (pre-transposed vs PyTorch); biases[i]: [out_i].
    Output dims are zero-padded to a 128 multiple (math-preserving through
    Linear+ReLU).  The first layer's input dim is left unpadded so x never
    needs a feature-padding pass.  Returns (weights, biases, num_output).
    """
    num_layers = len(weights)
    assert len(biases) == num_layers
    if param_dtype is None:
        param_dtype = weights[0].dtype

    out_pads = [_round_up(int(w.shape[1]), LANE) for w in weights]
    in_dims = [int(weights[0].shape[0])] + out_pads[:-1]

    pw, pb = [], []
    for li, (w, b) in enumerate(zip(weights, biases)):
        wp = jnp.zeros((in_dims[li], out_pads[li]), param_dtype)
        wp = wp.at[:w.shape[0], :w.shape[1]].set(w.astype(param_dtype))
        bp = jnp.zeros((1, out_pads[li]), jnp.float32)
        bp = bp.at[0, :b.shape[0]].set(b.astype(jnp.float32))
        pw.append(wp)
        pb.append(bp)

    return tuple(pw), tuple(pb), int(weights[-1].shape[1])


# --------------------------------------------------------------------------
# Forward wrapper
# --------------------------------------------------------------------------
def mlp_forward(x, padded_weights, padded_biases, num_output,
                output_activation=None, *, batch_tile=None):
    """Fused MLP forward using parameters prepared by prepare_mlp_params()."""
    num_layers = len(padded_weights)
    B, num_input = x.shape
    assert num_input == padded_weights[0].shape[0]
    out_pad = padded_weights[-1].shape[1]

    # ---- batch tile selection ---------------------------------------------
    # 128-row granularity for large batches (full MXU M passes on v5e),
    # 8-row otherwise.  Default 512-row tiles (~85% of HBM roofline vs ~63%
    # at 256), but keep >= 2 grid steps so the "parallel" batch axis shards
    # across v7x's two TensorCores.
    gran = LANE if B >= 2 * LANE else SUBLANE
    if batch_tile is None:
        batch_tile = 512
    TB = min(_round_up(B, gran), max(gran, _round_up(batch_tile, gran)))
    while TB > gran and _round_up(B, TB) // TB < 2:
        TB = max(gran, _round_up(TB // 2, gran))
    B_pad = _round_up(B, TB)
    grid = (B_pad // TB,)

    # Pad only the batch dim, and only when needed (no feature padding of x).
    xp = x if B_pad == B else jnp.zeros((B_pad, num_input), x.dtype).at[:B].set(x)

    # ---- VMEM budget --------------------------------------------------------
    def _isz(a):
        return jnp.dtype(a.dtype).itemsize

    param_bytes = sum(w.size * _isz(w) + b.size * 4
                      for w, b in zip(padded_weights, padded_biases))
    widths = [num_input] + [int(w.shape[1]) for w in padded_weights]
    act_io = 2 * TB * num_input * _isz(x) + 2 * TB * out_pad * _isz(x)
    interm = 4 * TB * max(widths) * 4        # f32 intermediates headroom
    needed = param_bytes + act_io + interm
    vmem_limit = int(min(64 << 20, max(32 << 20, int(needed * 1.25))))
    # TODO(synk): if resident params exceed ~48 MiB (v7x budget), tile the
    # widest weights with an extra N/K grid axis instead of keeping every
    # layer fully VMEM-resident.

    # ---- specs ---------------------------------------------------------------
    def _resident_spec(shape):
        # Constant index_map -> parameter stays VMEM-resident; single-buffer
        # it (default double-buffering would waste 2x its size in VMEM).
        try:
            return pl.BlockSpec(shape, lambda i: (0, 0),
                                pipeline_mode=pl.Buffered(1))
        except TypeError:
            return pl.BlockSpec(shape, lambda i: (0, 0))

    in_specs = [pl.BlockSpec((TB, num_input), lambda i: (i, 0))]
    operands = [xp]
    for li in range(num_layers):
        in_specs.append(_resident_spec(padded_weights[li].shape))
        in_specs.append(_resident_spec(padded_biases[li].shape))
        operands.append(padded_weights[li])
        operands.append(padded_biases[li])

    out_spec = pl.BlockSpec((TB, out_pad), lambda i: (i, 0))

    kernel = _make_mlp_kernel(num_layers, output_activation, num_output, out_pad)

    def _run(specs):
        return pl.pallas_call(
            kernel,
            out_shape=jax.ShapeDtypeStruct((B_pad, out_pad), x.dtype),
            grid=grid,
            in_specs=specs,
            out_specs=out_spec,
            compiler_params=pltpu.CompilerParams(
                dimension_semantics=("parallel",),
                vmem_limit_bytes=vmem_limit,
            ),
        )(*operands)

    try:
        out_padded = _run(in_specs)
    except Exception:
        # Fallback for jax versions that reject Buffered(1): default buffering.
        fallback = [in_specs[0]] + [pl.BlockSpec(op.shape, lambda i: (0, 0))
                                    for op in operands[1:]]
        out_padded = _run(fallback)

    # Slice off batch/feature padding; dtype already matches x.
    return out_padded[:B, :num_output]


# --------------------------------------------------------------------------
# Init + pure-JAX reference
# --------------------------------------------------------------------------
def init_mlp_params(key, hidden_channels, num_hidden_layers, num_input,
                    num_output, dtype=jnp.float32):
    """Deterministic init matching the shapes produced by MLP.__init__.

    Mimics torch.nn.Linear's default U(-1/sqrt(fan_in), 1/sqrt(fan_in)) init.
    Weights are returned pre-transposed as [in_features, out_features].
    """
    if num_hidden_layers == 0:
        dims = [(num_input, num_output)]
    else:
        dims = [(num_input, hidden_channels)]
        for _ in range(num_hidden_layers - 1):
            dims.append((hidden_channels, hidden_channels))
        dims.append((hidden_channels, num_output))

    weights, biases = [], []
    for (fan_in, fan_out) in dims:
        key, kw, kb = jax.random.split(key, 3)
        bound = 1.0 / sqrt(fan_in)
        w = jax.random.uniform(kw, (fan_in, fan_out), dtype,
                               minval=-bound, maxval=bound)
        b = jax.random.uniform(kb, (fan_out,), dtype,
                               minval=-bound, maxval=bound)
        weights.append(w)
        biases.append(b)
    return weights, biases


def mlp_reference(x, weights, biases, output_activation=None):
    """Pure-JAX reference for correctness checking."""
    n = len(weights)
    x = x.astype(jnp.float32)
    for i, (w, b) in enumerate(zip(weights, biases)):
        x = x @ w.astype(jnp.float32) + b.astype(jnp.float32)
        if i != n - 1:
            x = jnp.maximum(x, 0.0)
    if output_activation == "sigmoid":
        x = jax.nn.sigmoid(x)
    elif output_activation == "tanh":
        x = jnp.tanh(x)
    elif output_activation == "softmax":
        x = jax.nn.softmax(x, axis=-1)
    return x


if __name__ == "__main__":
    # MLP(hidden_channels=32, num_hidden_layers=2, num_input=16, num_output=8)
    # input x: [batch=64, num_input=16]; auto TB=32 -> 2 grid steps.
    hidden_channels = 32
    num_hidden_layers = 2
    num_input = 16
    num_output = 8
    batch = 64

    key = jax.random.PRNGKey(0)
    key, kx = jax.random.split(key)
    x = jax.random.normal(kx, (batch, num_input), jnp.float32)

    weights, biases = init_mlp_params(
        key, hidden_channels, num_hidden_layers, num_input, num_output)
    ref = mlp_reference(x, weights, biases, None)

    # Parameters padded/converted ONCE, reused across forward calls.
    pw, pb, nout = prepare_mlp_params(weights, biases)

    # 1) default (no output activation), f32 params — exact-path check.
    out = jax.block_until_ready(mlp_forward(x, pw, pb, nout, None))
    assert out.shape == (batch, num_output)
    assert jnp.allclose(out, ref, atol=1e-5, rtol=1e-5), "f32 mismatch"

    # 2) softmax output activation — exercises padded-lane masking.
    out_sm = jax.block_until_ready(mlp_forward(x, pw, pb, nout, "softmax"))
    ref_sm = mlp_reference(x, weights, biases, "softmax")
    assert jnp.allclose(out_sm, ref_sm, atol=1e-5, rtol=1e-5), "softmax mismatch"

    # 3) bf16 parameter storage (MXU fast path), f32 accumulation — loose tol.
    pw16, pb16, _ = prepare_mlp_params(weights, biases, param_dtype=jnp.bfloat16)
    out_bf = jax.block_until_ready(mlp_forward(x, pw16, pb16, nout, None))
    assert jnp.allclose(out_bf, ref, atol=1e-1, rtol=1e-1), "bf16 mismatch"

    print("KERNEL_OK")
</pallas_src>

<mosaic_0001>
module attributes {stable_mosaic.version = 11 : i64} {
  func.func @kernel(%arg0: i32, %arg1: memref<32x16xf32, #tpu.memory_space<vmem>>, %arg2: memref<16x128xf32, #tpu.memory_space<vmem>>, %arg3: memref<1x128xf32, #tpu.memory_space<vmem>>, %arg4: memref<128x128xf32, #tpu.memory_space<vmem>>, %arg5: memref<1x128xf32, #tpu.memory_space<vmem>>, %arg6: memref<128x128xf32, #tpu.memory_space<vmem>>, %arg7: memref<1x128xf32, #tpu.memory_space<vmem>>, %arg8: memref<32x128xf32, #tpu.memory_space<vmem>>) attributes {dimension_semantics = [#tpu.dimension_semantics<parallel>], iteration_bounds = array<i64: 2>, scalar_prefetch = 0 : i64, scratch_operands = 0 : i64, tpu.core_type = #tpu.core_type<tc>, window_params = [{transform_indices = @transform_0, window_bounds = array<i64: 32, 16>}, {pipeline_mode = #tpu.pipeline_mode<synchronous>, transform_indices = @transform_1, window_bounds = array<i64: 16, 128>}, {pipeline_mode = #tpu.pipeline_mode<synchronous>, transform_indices = @transform_2, window_bounds = array<i64: 1, 128>}, {pipeline_mode = #tpu.pipeline_mode<synchronous>, transform_indices = @transform_3, window_bounds = array<i64: 128, 128>}, {pipeline_mode = #tpu.pipeline_mode<synchronous>, transform_indices = @transform_4, window_bounds = array<i64: 1, 128>}, {pipeline_mode = #tpu.pipeline_mode<synchronous>, transform_indices = @transform_5, window_bounds = array<i64: 128, 128>}, {pipeline_mode = #tpu.pipeline_mode<synchronous>, transform_indices = @transform_6, window_bounds = array<i64: 1, 128>}, {transform_indices = @transform_7, window_bounds = array<i64: 32, 128>}]} {
    %c0 = arith.constant 0 : index
    %c0_0 = arith.constant 0 : index
    %0 = vector.load %arg1[%c0, %c0_0] : memref<32x16xf32, #tpu.memory_space<vmem>>, vector<32x16xf32>
    %c0_1 = arith.constant 0 : index
    %c0_2 = arith.constant 0 : index
    %1 = vector.load %arg2[%c0_1, %c0_2] : memref<16x128xf32, #tpu.memory_space<vmem>>, vector<16x128xf32>
    %c0_3 = arith.constant 0 : index
    %c0_4 = arith.constant 0 : index
    %2 = vector.load %arg3[%c0_3, %c0_4] : memref<1x128xf32, #tpu.memory_space<vmem>>, vector<1x128xf32>
    %cst = arith.constant dense<0.000000e+00> : vector<32x128xf32>
    %3 = tpu.matmul %0, %1, %cst {dimension_numbers = #tpu.dot_dimension_numbers<[1], [0], [0], [1], [0, 0, 1, 1], [], []>} : vector<32x16xf32>, vector<16x128xf32>, vector<32x128xf32> -> vector<32x128xf32>
    %4 = vector.broadcast %2 : vector<1x128xf32> to vector<32x128xf32>
    %5 = arith.addf %3, %4 : vector<32x128xf32>
    %cst_5 = arith.constant 0.000000e+00 : f32
    %6 = vector.broadcast %cst_5 : f32 to vector<32x128xf32>
    %7 = arith.maximumf %5, %6 : vector<32x128xf32>
    %c0_6 = arith.constant 0 : index
    %c0_7 = arith.constant 0 : index
    %8 = vector.load %arg4[%c0_6, %c0_7] : memref<128x128xf32, #tpu.memory_space<vmem>>, vector<128x128xf32>
    %c0_8 = arith.constant 0 : index
    %c0_9 = arith.constant 0 : index
    %9 = vector.load %arg5[%c0_8, %c0_9] : memref<1x128xf32, #tpu.memory_space<vmem>>, vector<1x128xf32>
    %cst_10 = arith.constant dense<0.000000e+00> : vector<32x128xf32>
    %10 = tpu.matmul %7, %8, %cst_10 {dimension_numbers = #tpu.dot_dimension_numbers<[1], [0], [0], [1], [0, 0, 1, 1], [], []>} : vector<32x128xf32>, vector<128x128xf32>, vector<32x128xf32> -> vector<32x128xf32>
    %11 = vector.broadcast %9 : vector<1x128xf32> to vector<32x128xf32>
    %12 = arith.addf %10, %11 : vector<32x128xf32>
    %cst_11 = arith.constant 0.000000e+00 : f32
    %13 = vector.broadcast %cst_11 : f32 to vector<32x128xf32>
    %14 = arith.maximumf %12, %13 : vector<32x128xf32>
    %c0_12 = arith.constant 0 : index
    %c0_13 = arith.constant 0 : index
    %15 = vector.load %arg6[%c0_12, %c0_13] : memref<128x128xf32, #tpu.memory_space<vmem>>, vector<128x128xf32>
    %c0_14 = arith.constant 0 : index
    %c0_15 = arith.constant 0 : index
    %16 = vector.load %arg7[%c0_14, %c0_15] : memref<1x128xf32, #tpu.memory_space<vmem>>, vector<1x128xf32>
    %cst_16 = arith.constant dense<0.000000e+00> : vector<32x128xf32>
    %17 = tpu.matmul %14, %15, %cst_16 {dimension_numbers = #tpu.dot_dimension_numbers<[1], [0], [0], [1], [0, 0, 1, 1], [], []>} : vector<32x128xf32>, vector<128x128xf32>, vector<32x128xf32> -> vector<32x128xf32>
    %18 = vector.broadcast %16 : vector<1x128xf32> to vector<32x128xf32>
    %19 = arith.addf %17, %18 : vector<32x128xf32>
    %c0_17 = arith.constant 0 : index
    %c0_18 = arith.constant 0 : index
    %20 = vector.load %arg8[%c0_17, %c0_18] : memref<32x128xf32, #tpu.memory_space<vmem>>, vector<32x128xf32>
    tpu.vector_store %arg8[%c0_17, %c0_18], %19 {strides = array<i32>} : memref<32x128xf32, #tpu.memory_space<vmem>>, vector<32x128xf32>,
    return
  }
  func.func @transform_0(%arg0: i32) -> (i32, i32) {
    %c0_i32 = arith.constant 0 : i32
    %c0_i32_0 = arith.constant 0 : i32
    return %arg0, %c0_i32 : i32, i32
  }
  func.func @transform_1(%arg0: i32) -> (i32, i32) {
    %c0_i32 = arith.constant 0 : i32
    %c0_i32_0 = arith.constant 0 : i32
    %c0_i32_1 = arith.constant 0 : i32
    return %c0_i32, %c0_i32_0 : i32, i32
  }
  func.func @transform_2(%arg0: i32) -> (i32, i32) {
    %c0_i32 = arith.constant 0 : i32
    %c0_i32_0 = arith.constant 0 : i32
    %c0_i32_1 = arith.constant 0 : i32
    return %c0_i32, %c0_i32_0 : i32, i32
  }
  func.func @transform_3(%arg0: i32) -> (i32, i32) {
    %c0_i32 = arith.constant 0 : i32
    %c0_i32_0 = arith.constant 0 : i32
    %c0_i32_1 = arith.constant 0 : i32
    return %c0_i32, %c0_i32_0 : i32, i32
  }
  func.func @transform_4(%arg0: i32) -> (i32, i32) {
    %c0_i32 = arith.constant 0 : i32
    %c0_i32_0 = arith.constant 0 : i32
    %c0_i32_1 = arith.constant 0 : i32
    return %c0_i32, %c0_i32_0 : i32, i32
  }
  func.func @transform_5(%arg0: i32) -> (i32, i32) {
    %c0_i32 = arith.constant 0 : i32
    %c0_i32_0 = arith.constant 0 : i32
    %c0_i32_1 = arith.constant 0 : i32
    return %c0_i32, %c0_i32_0 : i32, i32
  }
  func.func @transform_6(%arg0: i32) -> (i32, i32) {
    %c0_i32 = arith.constant 0 : i32
    %c0_i32_0 = arith.constant 0 : i32
    %c0_i32_1 = arith.constant 0 : i32
    return %c0_i32, %c0_i32_0 : i32, i32
  }
  func.func @transform_7(%arg0: i32) -> (i32, i32) {
    %c0_i32 = arith.constant 0 : i32
    %c0_i32_0 = arith.constant 0 : i32
    return %arg0, %c0_i32 : i32, i32
  }
}

module attributes {stable_mosaic.version = 11 : i64} {
  func.func @kernel(%arg0: i32, %arg1: memref<32x16xf32, #tpu.memory_space<vmem>>, %arg2: memref<16x128xf32, #tpu.memory_space<vmem>>, %arg3: memref<1x128xf32, #tpu.memory_space<vmem>>, %arg4: memref<128x128xf32, #tpu.memory_space<vmem>>, %arg5: memref<1x128xf32, #tpu.memory_space<vmem>>, %arg6: memref<128x128xf32, #tpu.memory_space<vmem>>, %arg7: memref<1x128xf32, #tpu.memory_space<vmem>>, %arg8: memref<32x128xf32, #tpu.memory_space<vmem>>) attributes {dimension_semantics = [#tpu.dimension_semantics<parallel>], iteration_bounds = array<i64: 2>, scalar_prefetch = 0 : i64, scratch_operands = 0 : i64, tpu.core_type = #tpu.core_type<tc>, window_params = [{transform_indices = @transform_0, window_bounds = array<i64: 32, 16>}, {pipeline_mode = #tpu.pipeline_mode<synchronous>, transform_indices = @transform_1, window_bounds = array<i64: 16, 128>}, {pipeline_mode = #tpu.pipeline_mode<synchronous>, transform_indices = @transform_2, window_bounds = array<i64: 1, 128>}, {pipeline_mode = #tpu.pipeline_mode<synchronous>, transform_indices = @transform_3, window_bounds = array<i64: 128, 128>}, {pipeline_mode = #tpu.pipeline_mode<synchronous>, transform_indices = @transform_4, window_bounds = array<i64: 1, 128>}, {pipeline_mode = #tpu.pipeline_mode<synchronous>, transform_indices = @transform_5, window_bounds = array<i64: 128, 128>}, {pipeline_mode = #tpu.pipeline_mode<synchronous>, transform_indices = @transform_6, window_bounds = array<i64: 1, 128>}, {transform_indices = @transform_7, window_bounds = array<i64: 32, 128>}]} {
    %c0 = arith.constant 0 : index
    %c0_0 = arith.constant 0 : index
    %0 = vector.load %arg1[%c0, %c0_0] : memref<32x16xf32, #tpu.memory_space<vmem>>, vector<32x16xf32>
    %c0_1 = arith.constant 0 : index
    %c0_2 = arith.constant 0 : index
    %1 = vector.load %arg2[%c0_1, %c0_2] : memref<16x128xf32, #tpu.memory_space<vmem>>, vector<16x128xf32>
    %c0_3 = arith.constant 0 : index
    %c0_4 = arith.constant 0 : index
    %2 = vector.load %arg3[%c0_3, %c0_4] : memref<1x128xf32, #tpu.memory_space<vmem>>, vector<1x128xf32>
    %cst = arith.constant dense<0.000000e+00> : vector<32x128xf32>
    %3 = tpu.matmul %0, %1, %cst {dimension_numbers = #tpu.dot_dimension_numbers<[1], [0], [0], [1], [0, 0, 1, 1], [], []>} : vector<32x16xf32>, vector<16x128xf32>, vector<32x128xf32> -> vector<32x128xf32>
    %4 = vector.broadcast %2 : vector<1x128xf32> to vector<32x128xf32>
    %5 = arith.addf %3, %4 : vector<32x128xf32>
    %cst_5 = arith.constant 0.000000e+00 : f32
    %6 = vector.broadcast %cst_5 : f32 to vector<32x128xf32>
    %7 = arith.maximumf %5, %6 : vector<32x128xf32>
    %c0_6 = arith.constant 0 : index
    %c0_7 = arith.constant 0 : index
    %8 = vector.load %arg4[%c0_6, %c0_7] : memref<128x128xf32, #tpu.memory_space<vmem>>, vector<128x128xf32>
    %c0_8 = arith.constant 0 : index
    %c0_9 = arith.constant 0 : index
    %9 = vector.load %arg5[%c0_8, %c0_9] : memref<1x128xf32, #tpu.memory_space<vmem>>, vector<1x128xf32>
    %cst_10 = arith.constant dense<0.000000e+00> : vector<32x128xf32>
    %10 = tpu.matmul %7, %8, %cst_10 {dimension_numbers = #tpu.dot_dimension_numbers<[1], [0], [0], [1], [0, 0, 1, 1], [], []>} : vector<32x128xf32>, vector<128x128xf32>, vector<32x128xf32> -> vector<32x128xf32>
    %11 = vector.broadcast %9 : vector<1x128xf32> to vector<32x128xf32>
    %12 = arith.addf %10, %11 : vector<32x128xf32>
    %cst_11 = arith.constant 0.000000e+00 : f32
    %13 = vector.broadcast %cst_11 : f32 to vector<32x128xf32>
    %14 = arith.maximumf %12, %13 : vector<32x128xf32>
    %c0_12 = arith.constant 0 : index
    %c0_13 = arith.constant 0 : index
    %15 = vector.load %arg6[%c0_12, %c0_13] : memref<128x128xf32, #tpu.memory_space<vmem>>, vector<128x128xf32>
    %c0_14 = arith.constant 0 : index
    %c0_15 = arith.constant 0 : index
    %16 = vector.load %arg7[%c0_14, %c0_15] : memref<1x128xf32, #tpu.memory_space<vmem>>, vector<1x128xf32>
    %cst_16 = arith.constant dense<0.000000e+00> : vector<32x128xf32>
    %17 = tpu.matmul %14, %15, %cst_16 {dimension_numbers = #tpu.dot_dimension_numbers<[1], [0], [0], [1], [0, 0, 1, 1], [], []>} : vector<32x128xf32>, vector<128x128xf32>, vector<32x128xf32> -> vector<32x128xf32>
    %18 = vector.broadcast %16 : vector<1x128xf32> to vector<32x128xf32>
    %19 = arith.addf %17, %18 : vector<32x128xf32>
    %c0_17 = arith.constant 0 : index
    %c0_18 = arith.constant 0 : index
    %20 = vector.load %arg8[%c0_17, %c0_18] : memref<32x128xf32, #tpu.memory_space<vmem>>, vector<32x128xf32>
    tpu.vector_store %arg8[%c0_17, %c0_18], %19 {strides = array<i32>} : memref<32x128xf32, #tpu.memory_space<vmem>>, vector<32x128xf32>,
    return
  }
  func.func @transform_0(%arg0: i32) -> (i32, i32) {
    %c0_i32 = arith.constant 0 : i32
    %c0_i32_0 = arith.constant 0 : i32
    return %arg0, %c0_i32 : i32, i32
  }
  func.func @transform_1(%arg0: i32) -> (i32, i32) {
    %c0_i32 = arith.constant 0 : i32
    %c0_i32_0 = arith.constant 0 : i32
    %c0_i32_1 = arith.constant 0 : i32
    return %c0_i32, %c0_i32_0 : i32, i32
  }
  func.func @transform_2(%arg0: i32) -> (i32, i32) {
    %c0_i32 = arith.constant 0 : i32
    %c0_i32_0 = arith.constant 0 : i32
    %c0_i32_1 = arith.constant 0 : i32
    return %c0_i32, %c0_i32_0 : i32, i32
  }
  func.func @transform_3(%arg0: i32) -> (i32, i32) {
    %c0_i32 = arith.constant 0 : i32
    %c0_i32_0 = arith.constant 0 : i32
    %c0_i32_1 = arith.constant 0 : i32
    return %c0_i32, %c0_i32_0 : i32, i32
  }
  func.func @transform_4(%arg0: i32) -> (i32, i32) {
    %c0_i32 = arith.constant 0 : i32
    %c0_i32_0 = arith.constant 0 : i32
    %c0_i32_1 = arith.constant 0 : i32
    return %c0_i32, %c0_i32_0 : i32, i32
  }
  func.func @transform_5(%arg0: i32) -> (i32, i32) {
    %c0_i32 = arith.constant 0 : i32
    %c0_i32_0 = arith.constant 0 : i32
    %c0_i32_1 = arith.constant 0 : i32
    return %c0_i32, %c0_i32_0 : i32, i32
  }
  func.func @transform_6(%arg0: i32) -> (i32, i32) {
    %c0_i32 = arith.constant 0 : i32
    %c0_i32_0 = arith.constant 0 : i32
    %c0_i32_1 = arith.constant 0 : i32
    return %c0_i32, %c0_i32_0 : i32, i32
  }
  func.func @transform_7(%arg0: i32) -> (i32, i32) {
    %c0_i32 = arith.constant 0 : i32
    %c0_i32_0 = arith.constant 0 : i32
    return %arg0, %c0_i32 : i32, i32
  }
}

</mosaic_0001>

<llo_original>
// kernel: tpu_custom_call.1
$region0: #{tpu_custom_call.1}
  #allocation0 [shape = 'u32[]', space=smem, size = 0x4, offset = 0x4, fixed_abs, tag = 'smem constant byte address 0x4 - core index']
  #allocation1 [shape = 'u32[72,128]{1,0:T(1,128)}', space=vmem, size = 0x9000, scoped, tag = 'internal scratch']
  %s0 = inlined_call_operand.vmem [shape: f32[64,16], index: 0, kind: input, shape index: {}]
  %s1 = inlined_call_operand.vmem [shape: f32[16,128], index: 1, kind: input, shape index: {}]
  %s2 = inlined_call_operand.vmem [shape: f32[1,128], index: 2, kind: input, shape index: {}]
  %s3 = inlined_call_operand.hbm [shape: f32[128,128], index: 3, kind: input, shape index: {}]
  %s4 = inlined_call_operand.vmem [shape: f32[1,128], index: 4, kind: input, shape index: {}]
  %s5 = inlined_call_operand.hbm [shape: f32[128,128], index: 5, kind: input, shape index: {}]
  %s6 = inlined_call_operand.vmem [shape: f32[1,128], index: 6, kind: input, shape index: {}]
  %s7 = inlined_call_operand.hbm [shape: f32[64,128], index: 7, kind: output, shape index: {}]
  %s8 = sld [smem:[#allocation0]]
  $region69: #{tpu_custom_call.1} parent=0
    _
  %s10 = ssub.s32 1, %s8
  %s11 = scalar_select 0, %s10, %s8
  $region1: #{tpu_custom_call.1} parent=0
    #allocation2 [shape = 'u8[65536]{0}', space=vmem, size = 0x10000, scoped, tag = 'input window, operand 3, single buffered']
    #allocation3 [shape = 's32[2]{0}', space=sflag, size = 0x8, scoped, tag = 'scoped memory for tpu_custom_call.1']
    #allocation4 [shape = 's32[2]{0}', space=sflag, size = 0x8, scoped, tag = 'scoped memory for tpu_custom_call.1']
    #allocation5 [shape = 'u8[65536]{0}', space=vmem, size = 0x10000, scoped, tag = 'input window, operand 5, single buffered']
    #allocation6 [shape = 's32[1]{0}', space=sflag, size = 0x4, scoped, tag = 'scoped memory for tpu_custom_call.1']
    #allocation7 [shape = 'u8[32768]{0}', space=vmem, size = 0x8000, scoped, tag = 'output window, operand 0']
    %12 = vsyncpa [#allocation3], 0
    %13 = vsyncpa [#allocation6], 0
    %14 = vsyncpa [#allocation4], 0
    %s15 = scalar_lea.sflag [#allocation4], 1
    %16 = vsyncpa %s15, 0
    loop: start=0, step=1, limit=4
    $region2: #{tpu_custom_call.1} parent=1 // loop_pre_header
      _
    $region3: #{tpu_custom_call.1} parent=1 // loop_header
      %s18 = sphi 0, %s22
      %p19 = scmp.ge.s32.totalorder %s18, 4
      %s28 = sphi 0, %s30
      %s31 = sphi 0, %s28
      %s32 = sphi 0, %s31
      %s48 = sphi 0, %s32
      %s52 = sphi 0, %s52
      %s54 = sphi 0, %s52
      %s55 = sphi 0, %s54
      %s69 = sphi 0, %s55
      %s73 = sphi 0, %s73
      %s75 = sphi 0, %s73
      %s76 = sphi 0, %s75
      %s90 = sphi 0, %s76
      %s94 = sphi 0, %s94
      %s96 = sphi 0, %s94
      %s97 = sphi 0, %s96
      %s111 = sphi 0, %s97
      %s115 = sphi 0, %s115
      %s117 = sphi 0, %s115
      %s118 = sphi 0, %s117
      %s132 = sphi 0, %s118
      %s136 = sphi 0, %s136
      %s138 = sphi 0, %s136
      %s139 = sphi 0, %s138
      %s153 = sphi 0, %s139
      %s157 = sphi 0, %s157
      %s159 = sphi 0, %s157
      %s160 = sphi 0, %s159
      %s174 = sphi 0, %s160
      %s180 = sphi 0, %s182
      %s183 = sphi 0, %s180
      %s184 = sphi 0, %s183
      %s200 = sphi 0, %s184
    $region4: #{tpu_custom_call.1} parent=1 // loop_header_branch
      %21 = sbr.rel (%p19) target = $region8
    $region5: #{tpu_custom_call.1} parent=1 // loop_body
      %s23 = ssub.s32 %s18, 1
      %s24 = ssub.s32 %s18, 2
      %s25 = sadd.s32 %s18, 1
      %s26 = ssub.s32 %s18, %s25
      %p27 = scmp.eq.s32.totalorder %s26, 0
      %s29 = sadd.s32 %s28, 1
      %s30 = scalar_select %p27, %s28, %s29
      %p33 = pneg %p27
      %p34 = scmp.eq.s32.totalorder %s18, 1
      %p35 = por %p33, %p34
      %p36 = scmp.ne.s32.totalorder %s28, %s31
      %p37 = scmp.eq.s32.totalorder %s18, 0
      %p38 = por %p36, %p37
      %p39 = scmp.ne.s32.totalorder %s28, %s31
      %p40 = scmp.eq.s32.totalorder %s23, 1
      %p41 = por %p39, %p40
      %p42 = scmp.ne.s32.totalorder %s31, %s32
      %p43 = scmp.eq.s32.totalorder %s23, 0
      %p44 = por %p42, %p43
      %p45 = scmp.ne.s32.totalorder %s31, %s32
      %p46 = scmp.eq.s32.totalorder %s24, 1
      %p47 = por %p45, %p46
      %p49 = scmp.ne.s32.totalorder %s32, %s48
      %p50 = scmp.eq.s32.totalorder %s24, 0
      %p51 = por %p49, %p50
      %s53 = sadd.s32 %s52, 1
      %p56 = scmp.eq.s32.totalorder %s18, 1
      %p57 = scmp.ne.s32.totalorder %s52, %s54
      %p58 = scmp.eq.s32.totalorder %s18, 0
      %p59 = por %p57, %p58
      %p60 = scmp.ne.s32.totalorder %s52, %s54
      %p61 = scmp.eq.s32.totalorder %s23, 1
      %p62 = por %p60, %p61
      %p63 = scmp.ne.s32.totalorder %s54, %s55
      %p64 = scmp.eq.s32.totalorder %s23, 0
      %p65 = por %p63, %p64
      %p66 = scmp.ne.s32.totalorder %s54, %s55
      %p67 = scmp.eq.s32.totalorder %s24, 1
      %p68 = por %p66, %p67
      %p70 = scmp.ne.s32.totalorder %s55, %s69
      %p71 = scmp.eq.s32.totalorder %s24, 0
      %p72 = por %p70, %p71
      %s74 = sadd.s32 %s73, 1
      %p77 = scmp.eq.s32.totalorder %s18, 1
      %p78 = scmp.ne.s32.totalorder %s73, %s75
      %p79 = scmp.eq.s32.totalorder %s18, 0
      %p80 = por %p78, %p79
      %p81 = scmp.ne.s32.totalorder %s73, %s75
      %p82 = scmp.eq.s32.totalorder %s23, 1
      %p83 = por %p81, %p82
      %p84 = scmp.ne.s32.totalorder %s75, %s76
      %p85 = scmp.eq.s32.totalorder %s23, 0
      %p86 = por %p84, %p85
      %p87 = scmp.ne.s32.totalorder %s75, %s76
      %p88 = scmp.eq.s32.totalorder %s24, 1
      %p89 = por %p87, %p88
      %p91 = scmp.ne.s32.totalorder %s76, %s90
      %p92 = scmp.eq.s32.totalorder %s24, 0
      %p93 = por %p91, %p92
      %s95 = sadd.s32 %s94, 1
      %p98 = scmp.eq.s32.totalorder %s18, 1
      %p99 = scmp.ne.s32.totalorder %s94, %s96
      %p100 = scmp.eq.s32.totalorder %s18, 0
      %p101 = por %p99, %p100
      %p102 = scmp.ne.s32.totalorder %s94, %s96
      %p103 = scmp.eq.s32.totalorder %s23, 1
      %p104 = por %p102, %p103
      %p105 = scmp.ne.s32.totalorder %s96, %s97
      %p106 = scmp.eq.s32.totalorder %s23, 0
      %p107 = por %p105, %p106
      %p108 = scmp.ne.s32.totalorder %s96, %s97
      %p109 = scmp.eq.s32.totalorder %s24, 1
      %p110 = por %p108, %p109
      %p112 = scmp.ne.s32.totalorder %s97, %s111
      %p113 = scmp.eq.s32.totalorder %s24, 0
      %p114 = por %p112, %p113
      %s116 = sadd.s32 %s115, 1
      %p119 = scmp.eq.s32.totalorder %s18, 1
      %p120 = scmp.ne.s32.totalorder %s115, %s117
      %p121 = scmp.eq.s32.totalorder %s18, 0
      %p122 = por %p120, %p121
      %p123 = scmp.ne.s32.totalorder %s115, %s117
      %p124 = scmp.eq.s32.totalorder %s23, 1
      %p125 = por %p123, %p124
      %p126 = scmp.ne.s32.totalorder %s117, %s118
      %p127 = scmp.eq.s32.totalorder %s23, 0
      %p128 = por %p126, %p127
      %p129 = scmp.ne.s32.totalorder %s117, %s118
      %p130 = scmp.eq.s32.totalorder %s24, 1
      %p131 = por %p129, %p130
      %p133 = scmp.ne.s32.totalorder %s118, %s132
      %p134 = scmp.eq.s32.totalorder %s24, 0
      %p135 = por %p133, %p134
      %s137 = sadd.s32 %s136, 1
      %p140 = scmp.eq.s32.totalorder %s18, 1
      %p141 = scmp.ne.s32.totalorder %s136, %s138
      %p142 = scmp.eq.s32.totalorder %s18, 0
      %p143 = por %p141, %p142
      %p144 = scmp.ne.s32.totalorder %s136, %s138
      %p145 = scmp.eq.s32.totalorder %s23, 1
      %p146 = por %p144, %p145
      %p147 = scmp.ne.s32.totalorder %s138, %s139
      %p148 = scmp.eq.s32.totalorder %s23, 0
      %p149 = por %p147, %p148
      %p150 = scmp.ne.s32.totalorder %s138, %s139
      %p151 = scmp.eq.s32.totalorder %s24, 1
      %p152 = por %p150, %p151
      %p154 = scmp.ne.s32.totalorder %s139, %s153
      %p155 = scmp.eq.s32.totalorder %s24, 0
      %p156 = por %p154, %p155
      %s158 = sadd.s32 %s157, 1
      %p161 = scmp.eq.s32.totalorder %s18, 1
      %p162 = scmp.ne.s32.totalorder %s157, %s159
      %p163 = scmp.eq.s32.totalorder %s18, 0
      %p164 = por %p162, %p163
      %p165 = scmp.ne.s32.totalorder %s157, %s159
      %p166 = scmp.eq.s32.totalorder %s23, 1
      %p167 = por %p165, %p166
      %p168 = scmp.ne.s32.totalorder %s159, %s160
      %p169 = scmp.eq.s32.totalorder %s23, 0
      %p170 = por %p168, %p169
      %p171 = scmp.ne.s32.totalorder %s159, %s160
      %p172 = scmp.eq.s32.totalorder %s24, 1
      %p173 = por %p171, %p172
      %p175 = scmp.ne.s32.totalorder %s160, %s174
      %p176 = scmp.eq.s32.totalorder %s24, 0
      %p177 = por %p175, %p176
      %s178 = ssub.s32 %s18, %s25
      %p179 = scmp.eq.s32.totalorder %s178, 0
      %s181 = sadd.s32 %s180, 1
      %s182 = scalar_select %p179, %s180, %s181
      %p185 = pneg %p179
      %p186 = scmp.eq.s32.totalorder %s18, 1
      %p187 = por %p185, %p186
      %p188 = scmp.ne.s32.totalorder %s180, %s183
      %p189 = scmp.eq.s32.totalorder %s18, 0
      %p190 = por %p188, %p189
      %p191 = scmp.ne.s32.totalorder %s180, %s183
      %p192 = scmp.eq.s32.totalorder %s23, 1
      %p193 = por %p191, %p192
      %p194 = scmp.ne.s32.totalorder %s183, %s184
      %p195 = scmp.eq.s32.totalorder %s23, 0
      %p196 = por %p194, %p195
      %p197 = scmp.ne.s32.totalorder %s183, %s184
      %p198 = scmp.eq.s32.totalorder %s24, 1
      %p199 = por %p197, %p198
      %p201 = scmp.ne.s32.totalorder %s184, %s200
      %p202 = scmp.eq.s32.totalorder %s24, 0
      %p203 = por %p201, %p202
      %p204 = scmp.le.s32.totalorder 1, %s18
      %p205 = scmp.lt.s32.totalorder %s18, 3
      %p206 = pnand %p204, %p205
      %p207 = pneg %p206
      // Predicated region
      $region9: #{tpu_custom_call.1} parent=5 // pred_check
        _
      $region10: #{tpu_custom_call.1} parent=5 // pred_check_branch
        %209 = sbr.rel (%p206) target = $region12
      $region11: #{tpu_custom_call.1} parent=5 // pred_region
        %s210 = ssub.s32 %s18, 1
        // Predicated region
        $region13: #{tpu_custom_call.1} parent=11 // pred_check
          %p211 = pneg %p65
        $region14: #{tpu_custom_call.1} parent=11 // pred_check_branch
          %213 = sbr.rel (%p211) target = $region16
        $region15: #{tpu_custom_call.1} parent=11 // pred_region
          _
        $region16: #{tpu_custom_call.1} parent=11 // pred_fallthru
          _
        // Predicated region
        $region17: #{tpu_custom_call.1} parent=11 // pred_check
          %p214 = pneg %p86
        $region18: #{tpu_custom_call.1} parent=11 // pred_check_branch
          %216 = sbr.rel (%p214) target = $region20
        $region19: #{tpu_custom_call.1} parent=11 // pred_region
          _
        $region20: #{tpu_custom_call.1} parent=11 // pred_fallthru
          _
        // Predicated region
        $region21: #{tpu_custom_call.1} parent=11 // pred_check
          %p217 = pneg %p107
        $region22: #{tpu_custom_call.1} parent=11 // pred_check_branch
          %219 = sbr.rel (%p217) target = $region24
        $region23: #{tpu_custom_call.1} parent=11 // pred_region
          %221 = vsyncadd [#allocation3], 0
          %s222 = sshll.u32 %s3, 4
          %s223 = int_to_ptr.hbm [resolvable:$true] %s222
          %s224 = sshll.u32 [#allocation2], 4
          %s225 = int_to_ptr.vmem [resolvable:$true] %s224
          %230 = dma.hbm_to_vmem [thread:$0]  %s223, 2048, %s225, [#allocation3], 128, 128, 8
        $region24: #{tpu_custom_call.1} parent=11 // pred_fallthru
          _
        // Predicated region
        $region25: #{tpu_custom_call.1} parent=11 // pred_check
          %p231 = pneg %p128
        $region26: #{tpu_custom_call.1} parent=11 // pred_check_branch
          %233 = sbr.rel (%p231) target = $region28
        $region27: #{tpu_custom_call.1} parent=11 // pred_region
          _
        $region28: #{tpu_custom_call.1} parent=11 // pred_fallthru
          _
        // Predicated region
        $region29: #{tpu_custom_call.1} parent=11 // pred_check
          %p234 = pneg %p149
        $region30: #{tpu_custom_call.1} parent=11 // pred_check_branch
          %236 = sbr.rel (%p234) target = $region32
        $region31: #{tpu_custom_call.1} parent=11 // pred_region
          %238 = vsyncadd [#allocation6], 0
          %s239 = sshll.u32 %s5, 4
          %s240 = int_to_ptr.hbm [resolvable:$true] %s239
          %s241 = sshll.u32 [#allocation5], 4
          %s242 = int_to_ptr.vmem [resolvable:$true] %s241
          %247 = dma.hbm_to_vmem [thread:$0]  %s240, 2048, %s242, [#allocation6], 128, 128, 8
        $region32: #{tpu_custom_call.1} parent=11 // pred_fallthru
          _
        // Predicated region
        $region33: #{tpu_custom_call.1} parent=11 // pred_check
          %p248 = pneg %p170
        $region34: #{tpu_custom_call.1} parent=11 // pred_check_branch
          %250 = sbr.rel (%p248) target = $region36
        $region35: #{tpu_custom_call.1} parent=11 // pred_region
          _
        $region36: #{tpu_custom_call.1} parent=11 // pred_fallthru
          _
      $region12: #{tpu_custom_call.1} parent=5 // pred_fallthru
        _
      %p251 = scmp.lt.s32.totalorder %s18, 2
      // Predicated region
      $region37: #{tpu_custom_call.1} parent=5 // pred_check
        %p252 = pneg %p251
      $region38: #{tpu_custom_call.1} parent=5 // pred_check_branch
        %254 = sbr.rel (%p252) target = $region40
      $region39: #{tpu_custom_call.1} parent=5 // pred_region
        // Predicated region
        $region41: #{tpu_custom_call.1} parent=39 // pred_check
          %p255 = pneg %p38
        $region42: #{tpu_custom_call.1} parent=39 // pred_check_branch
          %257 = sbr.rel (%p255) target = $region44
        $region43: #{tpu_custom_call.1} parent=39 // pred_region
          %s258 = smul.u32 4, %s18
          %p259 = scmp.lt.s32.totalorder %s258, 7
          %s260 = scalar_select %p259, %s258, 7
          %s261 = smul.addr %s260, 8
          %s262 = scalar_lea.vmem %s0, %s261
          %s263 = smul.u32 4, %s18
        $region44: #{tpu_custom_call.1} parent=39 // pred_fallthru
          _
      $region40: #{tpu_custom_call.1} parent=5 // pred_fallthru
        _
      %p264 = scmp.le.s32.totalorder 1, %s18
      %p265 = scmp.lt.s32.totalorder %s18, 3
      %p266 = pnand %p264, %p265
      %p267 = pneg %p266
      // Predicated region
      $region45: #{tpu_custom_call.1} parent=5 // pred_check
        _
      $region46: #{tpu_custom_call.1} parent=5 // pred_check_branch
        %269 = sbr.rel (%p266) target = $region48
      $region47: #{tpu_custom_call.1} parent=5 // pred_region
        %s270 = ssub.s32 %s18, 1
        // Predicated region
        $region49: #{tpu_custom_call.1} parent=47 // pred_check
          %p271 = pneg %p107
        $region50: #{tpu_custom_call.1} parent=47 // pred_check_branch
          %273 = sbr.rel (%p271) target = $region52
        $region51: #{tpu_custom_call.1} parent=47 // pred_region
          %275 = dma.done [#allocation3], 2048
        $region52: #{tpu_custom_call.1} parent=47 // pred_fallthru
          _
        // Predicated region
        $region53: #{tpu_custom_call.1} parent=47 // pred_check
          %p276 = pneg %p149
        $region54: #{tpu_custom_call.1} parent=47 // pred_check_branch
          %278 = sbr.rel (%p276) target = $region56
        $region55: #{tpu_custom_call.1} parent=47 // pred_region
          %280 = dma.done [#allocation6], 2048
        $region56: #{tpu_custom_call.1} parent=47 // pred_fallthru
          _
        %s281 = smul.u32 4, %s23
        %p282 = scmp.lt.s32.totalorder %s281, 7
        %s283 = scalar_select %p282, %s281, 7
        %s284 = smul.addr %s283, 8
        %s285 = scalar_lea.vmem %s0, %s284
        %p286 = pneg %p44
        %p287 = pneg %p41
        %p288 = pneg %p65
        %p289 = pneg %p62
        %p290 = pneg %p86
        %p291 = pneg %p83
        %p292 = pneg %p107
        %p293 = pneg %p104
        %p294 = pneg %p128
        %p295 = pneg %p125
        %p296 = pneg %p149
        %p297 = pneg %p146
        %p298 = pneg %p170
        %p299 = pneg %p167
        %p300 = pneg %p196
        %p301 = pneg %p193
        %s302 = sand.u32 %s183, 1
        %s303 = scalar_lea.sflag [#allocation4], %s302
        %s304 = sand.u32 %s183, 1
        %s305 = smul.addr %s304, 32
        %s306 = scalar_lea.vmem [#allocation7], %s305
        %s307 = smul.u32 4, %s23
        %p308 = scmp.lt.s32.totalorder %s307, 7
        %s309 = scalar_select %p308, %s307, 7
        %s310 = smul.addr %s309, 8
        %s311 = scalar_lea.vmem %s0, %s310
        %s312 = smul.u32 4, %s23
        %s313 = smul.u32 4, %s23
        %v314 = vld [vmem:[%s311] sm:$0xff]
        %v315 = vld [vmem:[%s311 + $0x8] sm:$0xff]
        %v316 = vld [vmem:[%s311 + $0x10] sm:$0xff]
        %v317 = vld [vmem:[%s311 + $0x18] sm:$0xff]
        %v318 = vld [vmem:[%s1] sm:$0xff]
        %v319 = vld [vmem:[%s1 + $0x8] sm:$0xff]
        %v320 = vld [vmem:[%s2] sm:$0x1]
        %v322 = vperm.slane %v320, 0
        %vm324 = vcmask 130048
        %v326 = vsel %vm324, %v314, 0
        %v329 = vsel %vm324, %v315, 0
        %v332 = vsel %vm324, %v316, 0
        %v335 = vsel %vm324, %v317, 0
        %337 = vmatpush.msra.mxu0 0.0
        %338 = vmatpush.msra.mxu0 0.0
        %339 = vmatpush.msra.mxu0 0.0
        %340 = vmatpush.msra.mxu0 0.0
        %341 = vmatpush.msra.mxu0 0.0
        %342 = vmatpush.msra.mxu0 0.0
        %343 = vmatpush.msra.mxu0 0.0
        %344 = vmatpush.msra.mxu0 0.0
        %345 = vmatpush.msra.mxu0 0.0
        %346 = vmatpush.msra.mxu0 0.0
        %347 = vmatpush.msra.mxu0 0.0
        %348 = vmatpush.msra.mxu0 0.0
        %349 = vmatpush.msra.mxu0 0.0
        %350 = vmatpush.msra.mxu0 0.0
        %351 = vmatpush.msra.mxu0 %v319
        %352 = vmatpush.msra.mxu0 %v318
        %353 = vmatmul.f32.gmra.mxu0 %v326
        %v354 = vpop.f32.mrf.mxu0
        %v355 = vadd.f32 %v322, %v354
        %356 = vmatmul.f32.gmra.mxu0 %v329
        %v357 = vpop.f32.mrf.mxu0
        %v358 = vadd.f32 %v322, %v357
        %359 = vmatmul.f32.gmra.mxu0 %v332
        %v360 = vpop.f32.mrf.mxu0
        %v361 = vadd.f32 %v322, %v360
        %362 = vmatmul.f32.gmra.mxu0 %v335
        %v363 = vpop.f32.mrf.mxu0
        %v364 = vadd.f32 %v322, %v363
        %365 = vdwg.mxu0
        %v366 = vmax.f32 %v355, 0.0
        %v367 = vmax.f32 %v358, 0.0
        %v368 = vmax.f32 %v361, 0.0
        %v369 = vmax.f32 %v364, 0.0
        %v370 = vld [vmem:[#allocation2] sm:$0xff]
        %v371 = vld [vmem:[#allocation2 + $0x8] sm:$0xff]
        %v372 = vld [vmem:[#allocation2 + $0x10] sm:$0xff]
        %v373 = vld [vmem:[#allocation2 + $0x18] sm:$0xff]
        %v374 = vld [vmem:[#allocation2 + $0x20] sm:$0xff]
        %v375 = vld [vmem:[#allocation2 + $0x28] sm:$0xff]
        %v376 = vld [vmem:[#allocation2 + $0x30] sm:$0xff]
        %v377 = vld [vmem:[#allocation2 + $0x38] sm:$0xff]
        %v378 = vld [vmem:[#allocation2 + $0x40] sm:$0xff]
        %v379 = vld [vmem:[#allocation2 + $0x48] sm:$0xff]
        %v380 = vld [vmem:[#allocation2 + $0x50] sm:$0xff]
        %v381 = vld [vmem:[#allocation2 + $0x58] sm:$0xff]
        %v382 = vld [vmem:[#allocation2 + $0x60] sm:$0xff]
        %v383 = vld [vmem:[#allocation2 + $0x68] sm:$0xff]
        %v384 = vld [vmem:[#allocation2 + $0x70] sm:$0xff]
        %v385 = vld [vmem:[#allocation2 + $0x78] sm:$0xff]
        %v386 = vld [vmem:[%s4] sm:$0x1]
        %v388 = vperm.slane %v386, 0
        %390 = vmatpush.msra.mxu0 %v385
        %391 = vmatpush.msra.mxu0 %v384
        %392 = vmatpush.msra.mxu0 %v383
        %393 = vmatpush.msra.mxu0 %v382
        %394 = vmatpush.msra.mxu0 %v381
        %395 = vmatpush.msra.mxu0 %v380
        %396 = vmatpush.msra.mxu0 %v379
        %397 = vmatpush.msra.mxu0 %v378
        %398 = vmatpush.msra.mxu0 %v377
        %399 = vmatpush.msra.mxu0 %v376
        %400 = vmatpush.msra.mxu0 %v375
        %401 = vmatpush.msra.mxu0 %v374
        %402 = vmatpush.msra.mxu0 %v373
        %403 = vmatpush.msra.mxu0 %v372
        %404 = vmatpush.msra.mxu0 %v371
        %405 = vmatpush.msra.mxu0 %v370
        %406 = vmatmul.f32.gmra.mxu0 %v366
        %v407 = vpop.f32.mrf.mxu0
        %v408 = vadd.f32 %v388, %v407
        %409 = vmatmul.f32.gmra.mxu0 %v367
        %v410 = vpop.f32.mrf.mxu0
        %v411 = vadd.f32 %v388, %v410
        %412 = vmatmul.f32.gmra.mxu0 %v368
        %v413 = vpop.f32.mrf.mxu0
        %v414 = vadd.f32 %v388, %v413
        %415 = vmatmul.f32.gmra.mxu0 %v369
        %v416 = vpop.f32.mrf.mxu0
        %v417 = vadd.f32 %v388, %v416
        %418 = vdwg.mxu0
        %v419 = vmax.f32 %v408, 0.0
        %v420 = vmax.f32 %v411, 0.0
        %v421 = vmax.f32 %v414, 0.0
        %v422 = vmax.f32 %v417, 0.0
        %v423 = vld [vmem:[#allocation5] sm:$0xff]
        %v424 = vld [vmem:[#allocation5 + $0x8] sm:$0xff]
        %v425 = vld [vmem:[#allocation5 + $0x10] sm:$0xff]
        %v426 = vld [vmem:[#allocation5 + $0x18] sm:$0xff]
        %v427 = vld [vmem:[#allocation5 + $0x20] sm:$0xff]
        %v428 = vld [vmem:[#allocation5 + $0x28] sm:$0xff]
        %v429 = vld [vmem:[#allocation5 + $0x30] sm:$0xff]
        %v430 = vld [vmem:[#allocation5 + $0x38] sm:$0xff]
        %v431 = vld [vmem:[#allocation5 + $0x40] sm:$0xff]
        %v432 = vld [vmem:[#allocation5 + $0x48] sm:$0xff]
        %v433 = vld [vmem:[#allocation5 + $0x50] sm:$0xff]
        %v434 = vld [vmem:[#allocation5 + $0x58] sm:$0xff]
        %v435 = vld [vmem:[#allocation5 + $0x60] sm:$0xff]
        %v436 = vld [vmem:[#allocation5 + $0x68] sm:$0xff]
        %v437 = vld [vmem:[#allocation5 + $0x70] sm:$0xff]
        %v438 = vld [vmem:[#allocation5 + $0x78] sm:$0xff]
        %v439 = vld [vmem:[%s6] sm:$0x1]
        %v441 = vperm.slane %v439, 0
        %443 = vmatpush.msra.mxu0 %v438
        %444 = vmatpush.msra.mxu0 %v437
        %445 = vmatpush.msra.mxu0 %v436
        %446 = vmatpush.msra.mxu0 %v435
        %447 = vmatpush.msra.mxu0 %v434
        %448 = vmatpush.msra.mxu0 %v433
        %449 = vmatpush.msra.mxu0 %v432
        %450 = vmatpush.msra.mxu0 %v431
        %451 = vmatpush.msra.mxu0 %v430
        %452 = vmatpush.msra.mxu0 %v429
        %453 = vmatpush.msra.mxu0 %v428
        %454 = vmatpush.msra.mxu0 %v427
        %455 = vmatpush.msra.mxu0 %v426
        %456 = vmatpush.msra.mxu0 %v425
        %457 = vmatpush.msra.mxu0 %v424
        %458 = vmatpush.msra.mxu0 %v423
        %459 = vmatmul.f32.gmra.mxu0 %v419
        %v460 = vpop.f32.mrf.mxu0
        %v461 = vadd.f32 %v441, %v460
        %462 = vmatmul.f32.gmra.mxu0 %v420
        %v463 = vpop.f32.mrf.mxu0
        %v464 = vadd.f32 %v441, %v463
        %465 = vmatmul.f32.gmra.mxu0 %v421
        %v466 = vpop.f32.mrf.mxu0
        %v467 = vadd.f32 %v441, %v466
        %468 = vmatmul.f32.gmra.mxu0 %v422
        %v469 = vpop.f32.mrf.mxu0
        %v470 = vadd.f32 %v441, %v469
        %471 = vdwg.mxu0
        %472 = vst [vmem:[%s306] sm:$0xff] %v461
        %473 = vst [vmem:[%s306 + $0x8] sm:$0xff] %v464
        %474 = vst [vmem:[%s306 + $0x10] sm:$0xff] %v467
        %475 = vst [vmem:[%s306 + $0x18] sm:$0xff] %v470
        %s476 = sand.u32 %s183, 1
        %s477 = scalar_lea.sflag [#allocation4], %s476
        %s478 = sand.u32 %s183, 1
        %s479 = smul.addr %s478, 32
        %s480 = scalar_lea.vmem [#allocation7], %s479
        // Predicated region
        $region57: #{tpu_custom_call.1} parent=47 // pred_check
          %p481 = pneg %p193
        $region58: #{tpu_custom_call.1} parent=47 // pred_check_branch
          %483 = sbr.rel (%p481) target = $region60
        $region59: #{tpu_custom_call.1} parent=47 // pred_region
          %s484 = smul.u32 4, %s23
          %486 = vsyncadd %s477, 0
          %s487 = smul.addr %s484, 8
          %s488 = scalar_lea.hbm %s7, %s487
          %s489 = sshll.u32 %s480, 4
          %s490 = int_to_ptr.vmem [resolvable:$true] %s489
          %s491 = sshll.u32 %s488, 4
          %s492 = int_to_ptr.hbm [resolvable:$true] %s491
          %497 = dma.vmem_to_hbm [thread:$0]  %s490, 512, %s492, %s477, 128, 128, 8
        $region60: #{tpu_custom_call.1} parent=47 // pred_fallthru
          _
      $region48: #{tpu_custom_call.1} parent=5 // pred_fallthru
        _
      %p498 = scmp.le.s32.totalorder 2, %s18
      // Predicated region
      $region61: #{tpu_custom_call.1} parent=5 // pred_check
        %p499 = pneg %p498
      $region62: #{tpu_custom_call.1} parent=5 // pred_check_branch
        %501 = sbr.rel (%p499) target = $region64
      $region63: #{tpu_custom_call.1} parent=5 // pred_region
        %s502 = ssub.s32 %s18, 2
        // Predicated region
        $region65: #{tpu_custom_call.1} parent=63 // pred_check
          %p503 = pneg %p199
        $region66: #{tpu_custom_call.1} parent=63 // pred_check_branch
          %505 = sbr.rel (%p503) target = $region68
        $region67: #{tpu_custom_call.1} parent=63 // pred_region
          %s506 = sand.u32 %s184, 1
          %s507 = scalar_lea.sflag [#allocation4], %s506
          %s508 = sand.u32 %s184, 1
          %s509 = smul.addr %s508, 32
          %s510 = scalar_lea.vmem [#allocation7], %s509
          %512 = dma.done %s507, 512
        $region68: #{tpu_custom_call.1} parent=63 // pred_fallthru
          _
      $region64: #{tpu_custom_call.1} parent=5 // pred_fallthru
        _
    $region6: #{tpu_custom_call.1} parent=1 // loop_footer
      %s22 = sadd.s32 1, %s18
    $region7: #{tpu_custom_call.1} parent=1 // loop_footer_branch
      %17 = sbr.rel target = $region3
    $region8: #{tpu_custom_call.1} parent=1 // loop_exit
      _
    %513 = vsyncpa [#allocation3], 1
    %s514 = scalar_lea.sflag [#allocation3], 1
    %515 = vsyncpa %s514, 1
    %516 = vsyncpa [#allocation6], 1
    %517 = vsyncpa [#allocation4], 1
    %s518 = scalar_lea.sflag [#allocation4], 1
    %519 = vsyncpa %s518, 1

// kernel: tpu_custom_call.1
$region0: #{tpu_custom_call.1}
  #allocation0 [shape = 'u32[]', space=smem, size = 0x4, offset = 0x4, fixed_abs, tag = 'smem constant byte address 0x4 - core index']
  #allocation1 [shape = 'u32[72,128]{1,0:T(1,128)}', space=vmem, size = 0x9000, scoped, tag = 'internal scratch']
  %s0 = inlined_call_operand.vmem [shape: f32[64,16], index: 0, kind: input, shape index: {}]
  %s1 = inlined_call_operand.vmem [shape: f32[16,128], index: 1, kind: input, shape index: {}]
  %s2 = inlined_call_operand.vmem [shape: f32[1,128], index: 2, kind: input, shape index: {}]
  %s3 = inlined_call_operand.hbm [shape: f32[128,128], index: 3, kind: input, shape index: {}]
  %s4 = inlined_call_operand.vmem [shape: f32[1,128], index: 4, kind: input, shape index: {}]
  %s5 = inlined_call_operand.hbm [shape: f32[128,128], index: 5, kind: input, shape index: {}]
  %s6 = inlined_call_operand.vmem [shape: f32[1,128], index: 6, kind: input, shape index: {}]
  %s7 = inlined_call_operand.hbm [shape: f32[64,128], index: 7, kind: output, shape index: {}]
  %s8 = sld [smem:[#allocation0]]
  $region69: #{tpu_custom_call.1} parent=0
    _
  %s10 = ssub.s32 1, %s8
  %s11 = scalar_select 0, %s10, %s8
  $region1: #{tpu_custom_call.1} parent=0
    #allocation2 [shape = 'u8[65536]{0}', space=vmem, size = 0x10000, scoped, tag = 'input window, operand 3, single buffered']
    #allocation3 [shape = 's32[2]{0}', space=sflag, size = 0x8, scoped, tag = 'scoped memory for tpu_custom_call.1']
    #allocation4 [shape = 's32[2]{0}', space=sflag, size = 0x8, scoped, tag = 'scoped memory for tpu_custom_call.1']
    #allocation5 [shape = 'u8[65536]{0}', space=vmem, size = 0x10000, scoped, tag = 'input window, operand 5, single buffered']
    #allocation6 [shape = 's32[1]{0}', space=sflag, size = 0x4, scoped, tag = 'scoped memory for tpu_custom_call.1']
    #allocation7 [shape = 'u8[32768]{0}', space=vmem, size = 0x8000, scoped, tag = 'output window, operand 0']
    %12 = vsyncpa [#allocation3], 0
    %13 = vsyncpa [#allocation6], 0
    %14 = vsyncpa [#allocation4], 0
    %s15 = scalar_lea.sflag [#allocation4], 1
    %16 = vsyncpa %s15, 0
    loop: start=0, step=1, limit=4
    $region2: #{tpu_custom_call.1} parent=1 // loop_pre_header
      _
    $region3: #{tpu_custom_call.1} parent=1 // loop_header
      %s18 = sphi 0, %s22
      %p19 = scmp.ge.s32.totalorder %s18, 4
      %s28 = sphi 0, %s30
      %s31 = sphi 0, %s28
      %s32 = sphi 0, %s31
      %s48 = sphi 0, %s32
      %s52 = sphi 0, %s52
      %s54 = sphi 0, %s52
      %s55 = sphi 0, %s54
      %s69 = sphi 0, %s55
      %s73 = sphi 0, %s73
      %s75 = sphi 0, %s73
      %s76 = sphi 0, %s75
      %s90 = sphi 0, %s76
      %s94 = sphi 0, %s94
      %s96 = sphi 0, %s94
      %s97 = sphi 0, %s96
      %s111 = sphi 0, %s97
      %s115 = sphi 0, %s115
      %s117 = sphi 0, %s115
      %s118 = sphi 0, %s117
      %s132 = sphi 0, %s118
      %s136 = sphi 0, %s136
      %s138 = sphi 0, %s136
      %s139 = sphi 0, %s138
      %s153 = sphi 0, %s139
      %s157 = sphi 0, %s157
      %s159 = sphi 0, %s157
      %s160 = sphi 0, %s159
      %s174 = sphi 0, %s160
      %s180 = sphi 0, %s182
      %s183 = sphi 0, %s180
      %s184 = sphi 0, %s183
      %s200 = sphi 0, %s184
    $region4: #{tpu_custom_call.1} parent=1 // loop_header_branch
      %21 = sbr.rel (%p19) target = $region8
    $region5: #{tpu_custom_call.1} parent=1 // loop_body
      %s23 = ssub.s32 %s18, 1
      %s24 = ssub.s32 %s18, 2
      %s25 = sadd.s32 %s18, 1
      %s26 = ssub.s32 %s18, %s25
      %p27 = scmp.eq.s32.totalorder %s26, 0
      %s29 = sadd.s32 %s28, 1
      %s30 = scalar_select %p27, %s28, %s29
      %p33 = pneg %p27
      %p34 = scmp.eq.s32.totalorder %s18, 1
      %p35 = por %p33, %p34
      %p36 = scmp.ne.s32.totalorder %s28, %s31
      %p37 = scmp.eq.s32.totalorder %s18, 0
      %p38 = por %p36, %p37
      %p39 = scmp.ne.s32.totalorder %s28, %s31
      %p40 = scmp.eq.s32.totalorder %s23, 1
      %p41 = por %p39, %p40
      %p42 = scmp.ne.s32.totalorder %s31, %s32
      %p43 = scmp.eq.s32.totalorder %s23, 0
      %p44 = por %p42, %p43
      %p45 = scmp.ne.s32.totalorder %s31, %s32
      %p46 = scmp.eq.s32.totalorder %s24, 1
      %p47 = por %p45, %p46
      %p49 = scmp.ne.s32.totalorder %s32, %s48
      %p50 = scmp.eq.s32.totalorder %s24, 0
      %p51 = por %p49, %p50
      %s53 = sadd.s32 %s52, 1
      %p56 = scmp.eq.s32.totalorder %s18, 1
      %p57 = scmp.ne.s32.totalorder %s52, %s54
      %p58 = scmp.eq.s32.totalorder %s18, 0
      %p59 = por %p57, %p58
      %p60 = scmp.ne.s32.totalorder %s52, %s54
      %p61 = scmp.eq.s32.totalorder %s23, 1
      %p62 = por %p60, %p61
      %p63 = scmp.ne.s32.totalorder %s54, %s55
      %p64 = scmp.eq.s32.totalorder %s23, 0
      %p65 = por %p63, %p64
      %p66 = scmp.ne.s32.totalorder %s54, %s55
      %p67 = scmp.eq.s32.totalorder %s24, 1
      %p68 = por %p66, %p67
      %p70 = scmp.ne.s32.totalorder %s55, %s69
      %p71 = scmp.eq.s32.totalorder %s24, 0
      %p72 = por %p70, %p71
      %s74 = sadd.s32 %s73, 1
      %p77 = scmp.eq.s32.totalorder %s18, 1
      %p78 = scmp.ne.s32.totalorder %s73, %s75
      %p79 = scmp.eq.s32.totalorder %s18, 0
      %p80 = por %p78, %p79
      %p81 = scmp.ne.s32.totalorder %s73, %s75
      %p82 = scmp.eq.s32.totalorder %s23, 1
      %p83 = por %p81, %p82
      %p84 = scmp.ne.s32.totalorder %s75, %s76
      %p85 = scmp.eq.s32.totalorder %s23, 0
      %p86 = por %p84, %p85
      %p87 = scmp.ne.s32.totalorder %s75, %s76
      %p88 = scmp.eq.s32.totalorder %s24, 1
      %p89 = por %p87, %p88
      %p91 = scmp.ne.s32.totalorder %s76, %s90
      %p92 = scmp.eq.s32.totalorder %s24, 0
      %p93 = por %p91, %p92
      %s95 = sadd.s32 %s94, 1
      %p98 = scmp.eq.s32.totalorder %s18, 1
      %p99 = scmp.ne.s32.totalorder %s94, %s96
      %p100 = scmp.eq.s32.totalorder %s18, 0
      %p101 = por %p99, %p100
      %p102 = scmp.ne.s32.totalorder %s94, %s96
      %p103 = scmp.eq.s32.totalorder %s23, 1
      %p104 = por %p102, %p103
      %p105 = scmp.ne.s32.totalorder %s96, %s97
      %p106 = scmp.eq.s32.totalorder %s23, 0
      %p107 = por %p105, %p106
      %p108 = scmp.ne.s32.totalorder %s96, %s97
      %p109 = scmp.eq.s32.totalorder %s24, 1
      %p110 = por %p108, %p109
      %p112 = scmp.ne.s32.totalorder %s97, %s111
      %p113 = scmp.eq.s32.totalorder %s24, 0
      %p114 = por %p112, %p113
      %s116 = sadd.s32 %s115, 1
      %p119 = scmp.eq.s32.totalorder %s18, 1
      %p120 = scmp.ne.s32.totalorder %s115, %s117
      %p121 = scmp.eq.s32.totalorder %s18, 0
      %p122 = por %p120, %p121
      %p123 = scmp.ne.s32.totalorder %s115, %s117
      %p124 = scmp.eq.s32.totalorder %s23, 1
      %p125 = por %p123, %p124
      %p126 = scmp.ne.s32.totalorder %s117, %s118
      %p127 = scmp.eq.s32.totalorder %s23, 0
      %p128 = por %p126, %p127
      %p129 = scmp.ne.s32.totalorder %s117, %s118
      %p130 = scmp.eq.s32.totalorder %s24, 1
      %p131 = por %p129, %p130
      %p133 = scmp.ne.s32.totalorder %s118, %s132
      %p134 = scmp.eq.s32.totalorder %s24, 0
      %p135 = por %p133, %p134
      %s137 = sadd.s32 %s136, 1
      %p140 = scmp.eq.s32.totalorder %s18, 1
      %p141 = scmp.ne.s32.totalorder %s136, %s138
      %p142 = scmp.eq.s32.totalorder %s18, 0
      %p143 = por %p141, %p142
      %p144 = scmp.ne.s32.totalorder %s136, %s138
      %p145 = scmp.eq.s32.totalorder %s23, 1
      %p146 = por %p144, %p145
      %p147 = scmp.ne.s32.totalorder %s138, %s139
      %p148 = scmp.eq.s32.totalorder %s23, 0
      %p149 = por %p147, %p148
      %p150 = scmp.ne.s32.totalorder %s138, %s139
      %p151 = scmp.eq.s32.totalorder %s24, 1
      %p152 = por %p150, %p151
      %p154 = scmp.ne.s32.totalorder %s139, %s153
      %p155 = scmp.eq.s32.totalorder %s24, 0
      %p156 = por %p154, %p155
      %s158 = sadd.s32 %s157, 1
      %p161 = scmp.eq.s32.totalorder %s18, 1
      %p162 = scmp.ne.s32.totalorder %s157, %s159
      %p163 = scmp.eq.s32.totalorder %s18, 0
      %p164 = por %p162, %p163
      %p165 = scmp.ne.s32.totalorder %s157, %s159
      %p166 = scmp.eq.s32.totalorder %s23, 1
      %p167 = por %p165, %p166
      %p168 = scmp.ne.s32.totalorder %s159, %s160
      %p169 = scmp.eq.s32.totalorder %s23, 0
      %p170 = por %p168, %p169
      %p171 = scmp.ne.s32.totalorder %s159, %s160
      %p172 = scmp.eq.s32.totalorder %s24, 1
      %p173 = por %p171, %p172
      %p175 = scmp.ne.s32.totalorder %s160, %s174
      %p176 = scmp.eq.s32.totalorder %s24, 0
      %p177 = por %p175, %p176
      %s178 = ssub.s32 %s18, %s25
      %p179 = scmp.eq.s32.totalorder %s178, 0
      %s181 = sadd.s32 %s180, 1
      %s182 = scalar_select %p179, %s180, %s181
      %p185 = pneg %p179
      %p186 = scmp.eq.s32.totalorder %s18, 1
      %p187 = por %p185, %p186
      %p188 = scmp.ne.s32.totalorder %s180, %s183
      %p189 = scmp.eq.s32.totalorder %s18, 0
      %p190 = por %p188, %p189
      %p191 = scmp.ne.s32.totalorder %s180, %s183
      %p192 = scmp.eq.s32.totalorder %s23, 1
      %p193 = por %p191, %p192
      %p194 = scmp.ne.s32.totalorder %s183, %s184
      %p195 = scmp.eq.s32.totalorder %s23, 0
      %p196 = por %p194, %p195
      %p197 = scmp.ne.s32.totalorder %s183, %s184
      %p198 = scmp.eq.s32.totalorder %s24, 1
      %p199 = por %p197, %p198
      %p201 = scmp.ne.s32.totalorder %s184, %s200
      %p202 = scmp.eq.s32.totalorder %s24, 0
      %p203 = por %p201, %p202
      %p204 = scmp.le.s32.totalorder 1, %s18
      %p205 = scmp.lt.s32.totalorder %s18, 3
      %p206 = pnand %p204, %p205
      %p207 = pneg %p206
      // Predicated region
      $region9: #{tpu_custom_call.1} parent=5 // pred_check
        _
      $region10: #{tpu_custom_call.1} parent=5 // pred_check_branch
        %209 = sbr.rel (%p206) target = $region12
      $region11: #{tpu_custom_call.1} parent=5 // pred_region
        %s210 = ssub.s32 %s18, 1
        // Predicated region
        $region13: #{tpu_custom_call.1} parent=11 // pred_check
          %p211 = pneg %p65
        $region14: #{tpu_custom_call.1} parent=11 // pred_check_branch
          %213 = sbr.rel (%p211) target = $region16
        $region15: #{tpu_custom_call.1} parent=11 // pred_region
          _
        $region16: #{tpu_custom_call.1} parent=11 // pred_fallthru
          _
        // Predicated region
        $region17: #{tpu_custom_call.1} parent=11 // pred_check
          %p214 = pneg %p86
        $region18: #{tpu_custom_call.1} parent=11 // pred_check_branch
          %216 = sbr.rel (%p214) target = $region20
        $region19: #{tpu_custom_call.1} parent=11 // pred_region
          _
        $region20: #{tpu_custom_call.1} parent=11 // pred_fallthru
          _
        // Predicated region
        $region21: #{tpu_custom_call.1} parent=11 // pred_check
          %p217 = pneg %p107
        $region22: #{tpu_custom_call.1} parent=11 // pred_check_branch
          %219 = sbr.rel (%p217) target = $region24
        $region23: #{tpu_custom_call.1} parent=11 // pred_region
          %221 = vsyncadd [#allocation3], 0
          %s222 = sshll.u32 %s3, 4
          %s223 = int_to_ptr.hbm [resolvable:$true] %s222
          %s224 = sshll.u32 [#allocation2], 4
          %s225 = int_to_ptr.vmem [resolvable:$true] %s224
          %230 = dma.hbm_to_vmem [thread:$0]  %s223, 2048, %s225, [#allocation3], 128, 128, 8
        $region24: #{tpu_custom_call.1} parent=11 // pred_fallthru
          _
        // Predicated region
        $region25: #{tpu_custom_call.1} parent=11 // pred_check
          %p231 = pneg %p128
        $region26: #{tpu_custom_call.1} parent=11 // pred_check_branch
          %233 = sbr.rel (%p231) target = $region28
        $region27: #{tpu_custom_call.1} parent=11 // pred_region
          _
        $region28: #{tpu_custom_call.1} parent=11 // pred_fallthru
          _
        // Predicated region
        $region29: #{tpu_custom_call.1} parent=11 // pred_check
          %p234 = pneg %p149
        $region30: #{tpu_custom_call.1} parent=11 // pred_check_branch
          %236 = sbr.rel (%p234) target = $region32
        $region31: #{tpu_custom_call.1} parent=11 // pred_region
          %238 = vsyncadd [#allocation6], 0
          %s239 = sshll.u32 %s5, 4
          %s240 = int_to_ptr.hbm [resolvable:$true] %s239
          %s241 = sshll.u32 [#allocation5], 4
          %s242 = int_to_ptr.vmem [resolvable:$true] %s241
          %247 = dma.hbm_to_vmem [thread:$0]  %s240, 2048, %s242, [#allocation6], 128, 128, 8
        $region32: #{tpu_custom_call.1} parent=11 // pred_fallthru
          _
        // Predicated region
        $region33: #{tpu_custom_call.1} parent=11 // pred_check
          %p248 = pneg %p170
        $region34: #{tpu_custom_call.1} parent=11 // pred_check_branch
          %250 = sbr.rel (%p248) target = $region36
        $region35: #{tpu_custom_call.1} parent=11 // pred_region
          _
        $region36: #{tpu_custom_call.1} parent=11 // pred_fallthru
          _
      $region12: #{tpu_custom_call.1} parent=5 // pred_fallthru
        _
      %p251 = scmp.lt.s32.totalorder %s18, 2
      // Predicated region
      $region37: #{tpu_custom_call.1} parent=5 // pred_check
        %p252 = pneg %p251
      $region38: #{tpu_custom_call.1} parent=5 // pred_check_branch
        %254 = sbr.rel (%p252) target = $region40
      $region39: #{tpu_custom_call.1} parent=5 // pred_region
        // Predicated region
        $region41: #{tpu_custom_call.1} parent=39 // pred_check
          %p255 = pneg %p38
        $region42: #{tpu_custom_call.1} parent=39 // pred_check_branch
          %257 = sbr.rel (%p255) target = $region44
        $region43: #{tpu_custom_call.1} parent=39 // pred_region
          %s258 = smul.u32 4, %s18
          %p259 = scmp.lt.s32.totalorder %s258, 7
          %s260 = scalar_select %p259, %s258, 7
          %s261 = smul.addr %s260, 8
          %s262 = scalar_lea.vmem %s0, %s261
          %s263 = smul.u32 4, %s18
        $region44: #{tpu_custom_call.1} parent=39 // pred_fallthru
          _
      $region40: #{tpu_custom_call.1} parent=5 // pred_fallthru
        _
      %p264 = scmp.le.s32.totalorder 1, %s18
      %p265 = scmp.lt.s32.totalorder %s18, 3
      %p266 = pnand %p264, %p265
      %p267 = pneg %p266
      // Predicated region
      $region45: #{tpu_custom_call.1} parent=5 // pred_check
        _
      $region46: #{tpu_custom_call.1} parent=5 // pred_check_branch
        %269 = sbr.rel (%p266) target = $region48
      $region47: #{tpu_custom_call.1} parent=5 // pred_region
        %s270 = ssub.s32 %s18, 1
        // Predicated region
        $region49: #{tpu_custom_call.1} parent=47 // pred_check
          %p271 = pneg %p107
        $region50: #{tpu_custom_call.1} parent=47 // pred_check_branch
          %273 = sbr.rel (%p271) target = $region52
        $region51: #{tpu_custom_call.1} parent=47 // pred_region
          %275 = dma.done [#allocation3], 2048
        $region52: #{tpu_custom_call.1} parent=47 // pred_fallthru
          _
        // Predicated region
        $region53: #{tpu_custom_call.1} parent=47 // pred_check
          %p276 = pneg %p149
        $region54: #{tpu_custom_call.1} parent=47 // pred_check_branch
          %278 = sbr.rel (%p276) target = $region56
        $region55: #{tpu_custom_call.1} parent=47 // pred_region
          %280 = dma.done [#allocation6], 2048
        $region56: #{tpu_custom_call.1} parent=47 // pred_fallthru
          _
        %s281 = smul.u32 4, %s23
        %p282 = scmp.lt.s32.totalorder %s281, 7
        %s283 = scalar_select %p282, %s281, 7
        %s284 = smul.addr %s283, 8
        %s285 = scalar_lea.vmem %s0, %s284
        %p286 = pneg %p44
        %p287 = pneg %p41
        %p288 = pneg %p65
        %p289 = pneg %p62
        %p290 = pneg %p86
        %p291 = pneg %p83
        %p292 = pneg %p107
        %p293 = pneg %p104
        %p294 = pneg %p128
        %p295 = pneg %p125
        %p296 = pneg %p149
        %p297 = pneg %p146
        %p298 = pneg %p170
        %p299 = pneg %p167
        %p300 = pneg %p196
        %p301 = pneg %p193
        %s302 = sand.u32 %s183, 1
        %s303 = scalar_lea.sflag [#allocation4], %s302
        %s304 = sand.u32 %s183, 1
        %s305 = smul.addr %s304, 32
        %s306 = scalar_lea.vmem [#allocation7], %s305
        %s307 = smul.u32 4, %s23
        %p308 = scmp.lt.s32.totalorder %s307, 7
        %s309 = scalar_select %p308, %s307, 7
        %s310 = smul.addr %s309, 8
        %s311 = scalar_lea.vmem %s0, %s310
        %s312 = smul.u32 4, %s23
        %s313 = smul.u32 4, %s23
        %v314 = vld [vmem:[%s311] sm:$0xff]
        %v315 = vld [vmem:[%s311 + $0x8] sm:$0xff]
        %v316 = vld [vmem:[%s311 + $0x10] sm:$0xff]
        %v317 = vld [vmem:[%s311 + $0x18] sm:$0xff]
        %v318 = vld [vmem:[%s1] sm:$0xff]
        %v319 = vld [vmem:[%s1 + $0x8] sm:$0xff]
        %v320 = vld [vmem:[%s2] sm:$0x1]
        %v322 = vperm.slane %v320, 0
        %vm324 = vcmask 130048
        %v326 = vsel %vm324, %v314, 0
        %v329 = vsel %vm324, %v315, 0
        %v332 = vsel %vm324, %v316, 0
        %v335 = vsel %vm324, %v317, 0
        %337 = vmatpush.msra.mxu0 0.0
        %338 = vmatpush.msra.mxu0 0.0
        %339 = vmatpush.msra.mxu0 0.0
        %340 = vmatpush.msra.mxu0 0.0
        %341 = vmatpush.msra.mxu0 0.0
        %342 = vmatpush.msra.mxu0 0.0
        %343 = vmatpush.msra.mxu0 0.0
        %344 = vmatpush.msra.mxu0 0.0
        %345 = vmatpush.msra.mxu0 0.0
        %346 = vmatpush.msra.mxu0 0.0
        %347 = vmatpush.msra.mxu0 0.0
        %348 = vmatpush.msra.mxu0 0.0
        %349 = vmatpush.msra.mxu0 0.0
        %350 = vmatpush.msra.mxu0 0.0
        %351 = vmatpush.msra.mxu0 %v319
        %352 = vmatpush.msra.mxu0 %v318
        %353 = vmatmul.f32.gmra.mxu0 %v326
        %v354 = vpop.f32.mrf.mxu0
        %v355 = vadd.f32 %v322, %v354
        %356 = vmatmul.f32.gmra.mxu0 %v329
        %v357 = vpop.f32.mrf.mxu0
        %v358 = vadd.f32 %v322, %v357
        %359 = vmatmul.f32.gmra.mxu0 %v332
        %v360 = vpop.f32.mrf.mxu0
        %v361 = vadd.f32 %v322, %v360
        %362 = vmatmul.f32.gmra.mxu0 %v335
        %v363 = vpop.f32.mrf.mxu0
        %v364 = vadd.f32 %v322, %v363
        %365 = vdwg.mxu0
        %v366 = vmax.f32 %v355, 0.0
        %v367 = vmax.f32 %v358, 0.0
        %v368 = vmax.f32 %v361, 0.0
        %v369 = vmax.f32 %v364, 0.0
        %v370 = vld [vmem:[#allocation2] sm:$0xff]
        %v371 = vld [vmem:[#allocation2 + $0x8] sm:$0xff]
        %v372 = vld [vmem:[#allocation2 + $0x10] sm:$0xff]
        %v373 = vld [vmem:[#allocation2 + $0x18] sm:$0xff]
        %v374 = vld [vmem:[#allocation2 + $0x20] sm:$0xff]
        %v375 = vld [vmem:[#allocation2 + $0x28] sm:$0xff]
        %v376 = vld [vmem:[#allocation2 + $0x30] sm:$0xff]
        %v377 = vld [vmem:[#allocation2 + $0x38] sm:$0xff]
        %v378 = vld [vmem:[#allocation2 + $0x40] sm:$0xff]
        %v379 = vld [vmem:[#allocation2 + $0x48] sm:$0xff]
        %v380 = vld [vmem:[#allocation2 + $0x50] sm:$0xff]
        %v381 = vld [vmem:[#allocation2 + $0x58] sm:$0xff]
        %v382 = vld [vmem:[#allocation2 + $0x60] sm:$0xff]
        %v383 = vld [vmem:[#allocation2 + $0x68] sm:$0xff]
        %v384 = vld [vmem:[#allocation2 + $0x70] sm:$0xff]
        %v385 = vld [vmem:[#allocation2 + $0x78] sm:$0xff]
        %v386 = vld [vmem:[%s4] sm:$0x1]
        %v388 = vperm.slane %v386, 0
        %390 = vmatpush.msra.mxu0 %v385
        %391 = vmatpush.msra.mxu0 %v384
        %392 = vmatpush.msra.mxu0 %v383
        %393 = vmatpush.msra.mxu0 %v382
        %394 = vmatpush.msra.mxu0 %v381
        %395 = vmatpush.msra.mxu0 %v380
        %396 = vmatpush.msra.mxu0 %v379
        %397 = vmatpush.msra.mxu0 %v378
        %398 = vmatpush.msra.mxu0 %v377
        %399 = vmatpush.msra.mxu0 %v376
        %400 = vmatpush.msra.mxu0 %v375
        %401 = vmatpush.msra.mxu0 %v374
        %402 = vmatpush.msra.mxu0 %v373
        %403 = vmatpush.msra.mxu0 %v372
        %404 = vmatpush.msra.mxu0 %v371
        %405 = vmatpush.msra.mxu0 %v370
        %406 = vmatmul.f32.gmra.mxu0 %v366
        %v407 = vpop.f32.mrf.mxu0
        %v408 = vadd.f32 %v388, %v407
        %409 = vmatmul.f32.gmra.mxu0 %v367
        %v410 = vpop.f32.mrf.mxu0
        %v411 = vadd.f32 %v388, %v410
        %412 = vmatmul.f32.gmra.mxu0 %v368
        %v413 = vpop.f32.mrf.mxu0
        %v414 = vadd.f32 %v388, %v413
        %415 = vmatmul.f32.gmra.mxu0 %v369
        %v416 = vpop.f32.mrf.mxu0
        %v417 = vadd.f32 %v388, %v416
        %418 = vdwg.mxu0
        %v419 = vmax.f32 %v408, 0.0
        %v420 = vmax.f32 %v411, 0.0
        %v421 = vmax.f32 %v414, 0.0
        %v422 = vmax.f32 %v417, 0.0
        %v423 = vld [vmem:[#allocation5] sm:$0xff]
        %v424 = vld [vmem:[#allocation5 + $0x8] sm:$0xff]
        %v425 = vld [vmem:[#allocation5 + $0x10] sm:$0xff]
        %v426 = vld [vmem:[#allocation5 + $0x18] sm:$0xff]
        %v427 = vld [vmem:[#allocation5 + $0x20] sm:$0xff]
        %v428 = vld [vmem:[#allocation5 + $0x28] sm:$0xff]
        %v429 = vld [vmem:[#allocation5 + $0x30] sm:$0xff]
        %v430 = vld [vmem:[#allocation5 + $0x38] sm:$0xff]
        %v431 = vld [vmem:[#allocation5 + $0x40] sm:$0xff]
        %v432 = vld [vmem:[#allocation5 + $0x48] sm:$0xff]
        %v433 = vld [vmem:[#allocation5 + $0x50] sm:$0xff]
        %v434 = vld [vmem:[#allocation5 + $0x58] sm:$0xff]
        %v435 = vld [vmem:[#allocation5 + $0x60] sm:$0xff]
        %v436 = vld [vmem:[#allocation5 + $0x68] sm:$0xff]
        %v437 = vld [vmem:[#allocation5 + $0x70] sm:$0xff]
        %v438 = vld [vmem:[#allocation5 + $0x78] sm:$0xff]
        %v439 = vld [vmem:[%s6] sm:$0x1]
        %v441 = vperm.slane %v439, 0
        %443 = vmatpush.msra.mxu0 %v438
        %444 = vmatpush.msra.mxu0 %v437
        %445 = vmatpush.msra.mxu0 %v436
        %446 = vmatpush.msra.mxu0 %v435
        %447 = vmatpush.msra.mxu0 %v434
        %448 = vmatpush.msra.mxu0 %v433
        %449 = vmatpush.msra.mxu0 %v432
        %450 = vmatpush.msra.mxu0 %v431
        %451 = vmatpush.msra.mxu0 %v430
        %452 = vmatpush.msra.mxu0 %v429
        %453 = vmatpush.msra.mxu0 %v428
        %454 = vmatpush.msra.mxu0 %v427
        %455 = vmatpush.msra.mxu0 %v426
        %456 = vmatpush.msra.mxu0 %v425
        %457 = vmatpush.msra.mxu0 %v424
        %458 = vmatpush.msra.mxu0 %v423
        %459 = vmatmul.f32.gmra.mxu0 %v419
        %v460 = vpop.f32.mrf.mxu0
        %v461 = vadd.f32 %v441, %v460
        %462 = vmatmul.f32.gmra.mxu0 %v420
        %v463 = vpop.f32.mrf.mxu0
        %v464 = vadd.f32 %v441, %v463
        %465 = vmatmul.f32.gmra.mxu0 %v421
        %v466 = vpop.f32.mrf.mxu0
        %v467 = vadd.f32 %v441, %v466
        %468 = vmatmul.f32.gmra.mxu0 %v422
        %v469 = vpop.f32.mrf.mxu0
        %v470 = vadd.f32 %v441, %v469
        %471 = vdwg.mxu0
        %472 = vst [vmem:[%s306] sm:$0xff] %v461
        %473 = vst [vmem:[%s306 + $0x8] sm:$0xff] %v464
        %474 = vst [vmem:[%s306 + $0x10] sm:$0xff] %v467
        %475 = vst [vmem:[%s306 + $0x18] sm:$0xff] %v470
        %s476 = sand.u32 %s183, 1
        %s477 = scalar_lea.sflag [#allocation4], %s476
        %s478 = sand.u32 %s183, 1
        %s479 = smul.addr %s478, 32
        %s480 = scalar_lea.vmem [#allocation7], %s479
        // Predicated region
        $region57: #{tpu_custom_call.1} parent=47 // pred_check
          %p481 = pneg %p193
        $region58: #{tpu_custom_call.1} parent=47 // pred_check_branch
          %483 = sbr.rel (%p481) target = $region60
        $region59: #{tpu_custom_call.1} parent=47 // pred_region
          %s484 = smul.u32 4, %s23
          %486 = vsyncadd %s477, 0
          %s487 = smul.addr %s484, 8
          %s488 = scalar_lea.hbm %s7, %s487
          %s489 = sshll.u32 %s480, 4
          %s490 = int_to_ptr.vmem [resolvable:$true] %s489
          %s491 = sshll.u32 %s488, 4
          %s492 = int_to_ptr.hbm [resolvable:$true] %s491
          %497 = dma.vmem_to_hbm [thread:$0]  %s490, 512, %s492, %s477, 128, 128, 8
        $region60: #{tpu_custom_call.1} parent=47 // pred_fallthru
          _
      $region48: #{tpu_custom_call.1} parent=5 // pred_fallthru
        _
      %p498 = scmp.le.s32.totalorder 2, %s18
      // Predicated region
      $region61: #{tpu_custom_call.1} parent=5 // pred_check
        %p499 = pneg %p498
      $region62: #{tpu_custom_call.1} parent=5 // pred_check_branch
        %501 = sbr.rel (%p499) target = $region64
      $region63: #{tpu_custom_call.1} parent=5 // pred_region
        %s502 = ssub.s32 %s18, 2
        // Predicated region
        $region65: #{tpu_custom_call.1} parent=63 // pred_check
          %p503 = pneg %p199
        $region66: #{tpu_custom_call.1} parent=63 // pred_check_branch
          %505 = sbr.rel (%p503) target = $region68
        $region67: #{tpu_custom_call.1} parent=63 // pred_region
          %s506 = sand.u32 %s184, 1
          %s507 = scalar_lea.sflag [#allocation4], %s506
          %s508 = sand.u32 %s184, 1
          %s509 = smul.addr %s508, 32
          %s510 = scalar_lea.vmem [#allocation7], %s509
          %512 = dma.done %s507, 512
        $region68: #{tpu_custom_call.1} parent=63 // pred_fallthru
          _
      $region64: #{tpu_custom_call.1} parent=5 // pred_fallthru
        _
    $region6: #{tpu_custom_call.1} parent=1 // loop_footer
      %s22 = sadd.s32 1, %s18
    $region7: #{tpu_custom_call.1} parent=1 // loop_footer_branch
      %17 = sbr.rel target = $region3
    $region8: #{tpu_custom_call.1} parent=1 // loop_exit
      _
    %513 = vsyncpa [#allocation3], 1
    %s514 = scalar_lea.sflag [#allocation3], 1
    %515 = vsyncpa %s514, 1
    %516 = vsyncpa [#allocation6], 1
    %517 = vsyncpa [#allocation4], 1
    %s518 = scalar_lea.sflag [#allocation4], 1
    %519 = vsyncpa %s518, 1

</llo_original>
